<compile_context>
chip_gen: v5e
topology: v5e:2x2
jax: 0.10.0
libtpu: 0.0.40
codegen_flags: <defaults>
</compile_context>

<pallas_src>
import math

import numpy as np
import jax
import jax.numpy as jnp
from jax.experimental import pallas as pl
from jax.experimental.pallas import tpu as pltpu


def _round_up(x, m):
    return ((x + m - 1) // m) * m


def _trainer_forward_kernel(x_ref, w_ref, y_ref, scal_ref, part_ref):
    """One (block_b, D) batch tile -> 4 partial sums per outer grid block.

    part_ref lanes: 0 = sum(BCE loss), 1 = sum(pred), 2 = sum(label),
                    3 = sum(pred * label)  (all over this outer block's rows).
    """
    i = pl.program_id(1)                       # inner (reduction) axis

    bias = scal_ref[0]
    pos_w = scal_ref[1]
    logit_thresh = scal_ref[2]                 # log(th/(1-th)): sigmoid(x)>th <=> x>this

    # ---- synthetic MultiTaskModel: single linear head on the MXU -----------
    logits = jnp.dot(x_ref[...], w_ref[...],
                     preferred_element_type=jnp.float32) + bias        # (TB, 1)
    y = y_ref[...].astype(jnp.float32)                                 # (TB, 1)

    # ---- nn.BCEWithLogitsLoss(pos_weight), numerically stable --------------
    # softplus(-x) = max(-x, 0) + log(1 + exp(-|x|))
    sp_neg = jnp.maximum(-logits, 0.0) + jnp.log(1.0 + jnp.exp(-jnp.abs(logits)))
    per_example = pos_w * y * sp_neg + (1.0 - y) * (logits + sp_neg)

    # ---- predictions in logit space (monotonic, sigmoid/EUP dropped) -------
    p = (logits > logit_thresh).astype(jnp.float32)
    t = (y > 0.5).astype(jnp.float32)

    loss_s = jnp.sum(per_example)
    p_s = jnp.sum(p)
    t_s = jnp.sum(t)
    tp_s = jnp.sum(p * t)

    # Pack the 4 tile sums into lanes 0..3 of a (1, 1, 128) row (pure VPU ops,
    # no single-element VMEM stores, no SMEM scalar RMW chain).
    lane = jax.lax.broadcasted_iota(jnp.int32, part_ref.shape, 2)
    row = (jnp.where(lane == 0, loss_s, 0.0)
           + jnp.where(lane == 1, p_s, 0.0)
           + jnp.where(lane == 2, t_s, 0.0)
           + jnp.where(lane == 3, tp_s, 0.0))

    @pl.when(i == 0)
    def _init():
        part_ref[...] = jnp.zeros_like(part_ref)

    part_ref[...] += row


def _pick_block_b(batch, d, itemsize):
    # ~2 MiB x tile per buffer (>=85% of HBM roofline per measured tiling
    # data); cap at 4096 rows so the lane-padded (TB, 1) label buffer stays
    # <= 2 MiB (v7x 64 MiB VMEM safe); multiple of 8 rows.
    rows = (2 * 1024 * 1024) // max(1, d * itemsize)
    rows = max(8, min(4096, rows))
    rows = min(rows, _round_up(batch, 8))
    return max(8, (rows // 8) * 8)


def multitask_trainer_forward(x, label, w, bias, pos_weight, threshold,
                              *, block_b=None, stream_dtype=None):
    """Returns (loss, accuracy, confusion_matrix) like MultiTaskTrainer.forward.

    stream_dtype: optionally stream x/w as e.g. jnp.bfloat16 (halves HBM
    traffic; logits/loss math stays f32).  Default keeps the input dtype.
    """
    B, D = x.shape
    itemsize = jnp.dtype(x.dtype if stream_dtype is None else stream_dtype).itemsize
    if block_b is None:
        block_b = _pick_block_b(B, D, itemsize)
    block_b = max(8, (int(block_b) // 8) * 8)

    nblk = pl.cdiv(B, block_b)
    # Outer "parallel" axis >= 2 lets v7x shard the batch across its 2 TCs
    # (harmless no-op on single-TC v5e/v6e); inner axis is the reduction.
    n_outer = 1 if nblk == 1 else 2
    n_inner = pl.cdiv(nblk, n_outer)
    padded_b = n_outer * n_inner * block_b
    pad = padded_b - B

    x_p = x if stream_dtype is None else x.astype(stream_dtype)
    if pad:
        x_p = jnp.pad(x_p, ((0, pad), (0, 0)))          # pad rows are all-zero
    lbl = label.astype(jnp.float32).reshape(B, 1)
    lbl_p = jnp.pad(lbl, ((0, pad), (0, 0))) if pad else lbl
    w_col = w.reshape(D, 1).astype(x_p.dtype)

    # Guard threshold away from 0/1 before the logit transform.
    th = min(max(float(threshold), 1e-6), 1.0 - 1e-6)
    bias32 = np.float32(bias)
    lth32 = np.float32(math.log(th / (1.0 - th)))
    scal = jnp.array([bias32, np.float32(pos_weight), lth32], dtype=jnp.float32)

    # Explicit VMEM budget (double-buffered x + lane-padded label + w blocks).
    x_tile_bytes = block_b * D * itemsize
    y_tile_bytes = (_round_up(block_b, 8) // 8) * 4096   # (TB,1) pads lanes 1->128
    w_tile_bytes = (_round_up(D, 8) // 8) * 4096
    vmem_need = 2 * (x_tile_bytes + y_tile_bytes + w_tile_bytes) + (1 << 20)
    vmem_limit = int(min(48 * 1024 * 1024, max(16 * 1024 * 1024, 2 * vmem_need)))

    grid_spec = pltpu.PrefetchScalarGridSpec(
        num_scalar_prefetch=0,
        grid=(n_outer, n_inner),
        in_specs=[
            pl.BlockSpec((block_b, D), lambda j, i: (j * n_inner + i, 0)),   # x
            pl.BlockSpec((D, 1), lambda j, i: (0, 0)),                       # w (resident)
            pl.BlockSpec((block_b, 1), lambda j, i: (j * n_inner + i, 0)),   # labels
            pl.BlockSpec(memory_space=pltpu.MemorySpace.SMEM),               # scalars
        ],
        out_specs=pl.BlockSpec((1, 1, 128), lambda j, i: (j, 0, 0)),         # partials
    )

    cost = pl.CostEstimate(
        flops=2 * padded_b * D + 20 * padded_b,
        transcendentals=2 * padded_b,
        bytes_accessed=padded_b * D * itemsize + padded_b * 4 + D * 4 + n_outer * 512,
    )

    parts = pl.pallas_call(
        _trainer_forward_kernel,
        out_shape=jax.ShapeDtypeStruct((n_outer, 1, 128), jnp.float32),
        grid_spec=grid_spec,
        compiler_params=pltpu.CompilerParams(
            dimension_semantics=("parallel", "arbitrary"),
            vmem_limit_bytes=vmem_limit,
        ),
        cost_estimate=cost,
    )(x_p, w_col, lbl_p, scal)

    # ---- finalize in the wrapper (tiny, improves f32 accumulation a bit) ---
    sums = jnp.sum(parts, axis=(0, 1))                   # (128,)
    loss_sum = sums[0]
    p_sum = sums[1]
    t_sum = sums[2]
    tp = sums[3]

    if pad:
        # Pad rows are x=0, y=0 -> logit == bias exactly; subtract their exact
        # (known) contribution instead of masking in-kernel.
        b = float(bias32)
        sp_neg_b = max(-b, 0.0) + math.log1p(math.exp(-abs(b)))
        loss_sum = loss_sum - float(pad) * (b + sp_neg_b)
        if float(bias32) > float(lth32):
            p_sum = p_sum - float(pad)

    inv_n = 1.0 / float(B)                               # exact for B < 2^24
    loss = loss_sum * inv_n
    fp = p_sum - tp
    fn = t_sum - tp
    tn = float(B) - tp - fp - fn
    acc = (tp + tn) * inv_n
    cm = jnp.round(jnp.stack([jnp.stack([tn, fp]),
                              jnp.stack([fn, tp])])).astype(jnp.int32)
    return loss, acc, cm


if __name__ == "__main__":
    key = jax.random.PRNGKey(0)
    kx, kw, kl = jax.random.split(key, 3)

    # Small shapes; second run forces small tiles so the multi-tile grid,
    # megacore-style outer split, and padding-correction paths are exercised.
    B, D = 200, 64
    x = jax.random.normal(kx, (B, D), dtype=jnp.float32)
    label = (jax.random.uniform(kl, (B,)) > 0.5).astype(jnp.float32)

    # kaiming_normal_(weight, a=0.2, nonlinearity='leaky_relu'), fan_in = D
    gain = math.sqrt(2.0 / (1.0 + 0.2 ** 2))
    std = gain / math.sqrt(D)
    w = std * jax.random.normal(kw, (D,), dtype=jnp.float32)
    bias = 0.0

    # args.numberOfNonSpammer / args.numberOfSpammer, args.threshold
    pos_weight = 3.0
    threshold = 0.5

    # ---- pure-JAX reference -------------------------------------------------
    logits = x @ w + bias
    sp_neg = jnp.maximum(-logits, 0.0) + jnp.log(1.0 + jnp.exp(-jnp.abs(logits)))
    ref_loss = jnp.mean(pos_weight * label * sp_neg
                        + (1.0 - label) * (logits + sp_neg))
    pred = jax.nn.sigmoid(logits) > threshold
    tgt = label > 0.5
    ref_acc = jnp.mean((pred == tgt).astype(jnp.float32))
    r_tp = jnp.sum(pred & tgt)
    r_fp = jnp.sum(pred & ~tgt)
    r_fn = jnp.sum(~pred & tgt)
    r_tn = jnp.sum(~pred & ~tgt)
    ref_cm = jnp.array([[r_tn, r_fp], [r_fn, r_tp]], dtype=jnp.int32)

    for bb in (None, 64):       # auto (single tile) and forced 2x2 grid + padding
        loss, acc, cm = multitask_trainer_forward(
            x, label, w, bias, pos_weight, threshold, block_b=bb)
        jax.block_until_ready((loss, acc, cm))

        assert abs(float(loss) - float(ref_loss)) < 1e-4, (bb, loss, ref_loss)
        assert abs(float(acc) - float(ref_acc)) < 1e-2, (bb, acc, ref_acc)
        assert int(jnp.abs(cm - ref_cm).max()) <= 1, (bb, cm, ref_cm)
        assert int(cm.sum()) == B, (bb, cm)

    print("KERNEL_OK")
</pallas_src>

<mosaic_0001>
module attributes {stable_mosaic.version = 11 : i64} {
  func.func @_trainer_forward_kernel(%arg0: i32, %arg1: i32, %arg2: memref<200x64xf32, #tpu.memory_space<vmem>>, %arg3: memref<64x1xf32, #tpu.memory_space<vmem>>, %arg4: memref<200x1xf32, #tpu.memory_space<vmem>>, %arg5: memref<3xf32, #tpu.memory_space<smem>>, %arg6: memref<1x1x128xf32, #tpu.memory_space<vmem>>) attributes {dimension_semantics = [#tpu.dimension_semantics<parallel>, #tpu.dimension_semantics<arbitrary>], iteration_bounds = array<i64: 1, 1>, scalar_prefetch = 0 : i64, scratch_operands = 0 : i64, tpu.core_type = #tpu.core_type<tc>, window_params = [{transform_indices = @transform_0, window_bounds = array<i64: 200, 64>}, {pipeline_mode = #tpu.pipeline_mode<synchronous>, transform_indices = @transform_1, window_bounds = array<i64: 64, 1>}, {transform_indices = @transform_2, window_bounds = array<i64: 200, 1>}, {transform_indices = @transform_3, window_bounds = array<i64: 3>}, {transform_indices = @transform_4, window_bounds = array<i64: 1, 1, 128>}]} {
    %c0 = arith.constant 0 : index
    %0 = memref.load %arg5[%c0] : memref<3xf32, #tpu.memory_space<smem>>
    %c1 = arith.constant 1 : index
    %1 = memref.load %arg5[%c1] : memref<3xf32, #tpu.memory_space<smem>>
    %c2 = arith.constant 2 : index
    %2 = memref.load %arg5[%c2] : memref<3xf32, #tpu.memory_space<smem>>
    %c0_0 = arith.constant 0 : index
    %c0_1 = arith.constant 0 : index
    %3 = vector.load %arg2[%c0_0, %c0_1] : memref<200x64xf32, #tpu.memory_space<vmem>>, vector<200x64xf32>
    %c0_2 = arith.constant 0 : index
    %c0_3 = arith.constant 0 : index
    %4 = vector.load %arg3[%c0_2, %c0_3] : memref<64x1xf32, #tpu.memory_space<vmem>>, vector<64x1xf32>
    %cst = arith.constant dense<0.000000e+00> : vector<200x1xf32>
    %5 = tpu.matmul %3, %4, %cst {dimension_numbers = #tpu.dot_dimension_numbers<[1], [0], [0], [1], [0, 0, 1, 1], [], []>} : vector<200x64xf32>, vector<64x1xf32>, vector<200x1xf32> -> vector<200x1xf32>
    %6 = vector.broadcast %0 : f32 to vector<200x1xf32>
    %7 = arith.addf %5, %6 : vector<200x1xf32>
    %c0_4 = arith.constant 0 : index
    %c0_5 = arith.constant 0 : index
    %8 = vector.load %arg4[%c0_4, %c0_5] : memref<200x1xf32, #tpu.memory_space<vmem>>, vector<200x1xf32>
    %cst_6 = arith.constant 0.000000e+00 : f32
    %9 = vector.broadcast %cst_6 : f32 to vector<200x1xf32>
    %10 = arith.subf %9, %7 : vector<200x1xf32>
    %cst_7 = arith.constant 0.000000e+00 : f32
    %11 = vector.broadcast %cst_7 : f32 to vector<200x1xf32>
    %12 = arith.maximumf %10, %11 : vector<200x1xf32>
    %13 = math.absf %7 : vector<200x1xf32>
    %cst_8 = arith.constant 0.000000e+00 : f32
    %14 = vector.broadcast %cst_8 : f32 to vector<200x1xf32>
    %15 = arith.subf %14, %13 : vector<200x1xf32>
    %16 = math.exp %15 : vector<200x1xf32>
    %cst_9 = arith.constant 1.000000e+00 : f32
    %17 = vector.broadcast %cst_9 : f32 to vector<200x1xf32>
    %18 = arith.addf %17, %16 : vector<200x1xf32>
    %19 = math.log %18 : vector<200x1xf32>
    %20 = arith.addf %12, %19 : vector<200x1xf32>
    %21 = vector.broadcast %1 : f32 to vector<200x1xf32>
    %22 = arith.mulf %21, %8 : vector<200x1xf32>
    %23 = arith.mulf %22, %20 : vector<200x1xf32>
    %cst_10 = arith.constant 1.000000e+00 : f32
    %24 = vector.broadcast %cst_10 : f32 to vector<200x1xf32>
    %25 = arith.subf %24, %8 : vector<200x1xf32>
    %26 = arith.addf %7, %20 : vector<200x1xf32>
    %27 = arith.mulf %25, %26 : vector<200x1xf32>
    %28 = arith.addf %23, %27 : vector<200x1xf32>
    %29 = vector.broadcast %2 : f32 to vector<200x1xf32>
    %30 = arith.cmpf ogt, %7, %29 : vector<200x1xf32>
    %31 = arith.extui %30 : vector<200x1xi1> to vector<200x1xi32>
    %32 = arith.sitofp %31 : vector<200x1xi32> to vector<200x1xf32>
    %cst_11 = arith.constant 5.000000e-01 : f32
    %33 = vector.broadcast %cst_11 : f32 to vector<200x1xf32>
    %34 = arith.cmpf ogt, %8, %33 : vector<200x1xf32>
    %35 = arith.extui %34 : vector<200x1xi1> to vector<200x1xi32>
    %36 = arith.sitofp %35 : vector<200x1xi32> to vector<200x1xf32>
    %37 = vector.shape_cast %28 : vector<200x1xf32> to vector<1x200x1xf32>
    %cst_12 = arith.constant dense<0.000000e+00> : vector<1xf32>
    %38 = vector.multi_reduction <add>, %37, %cst_12 [1, 2] : vector<1x200x1xf32> to vector<1xf32>
    %39 = vector.shape_cast %38 : vector<1xf32> to vector<1x1x1xf32>
    %40 = vector.extract %39[0, 0, 0] : f32 from vector<1x1x1xf32>
    %41 = vector.shape_cast %32 : vector<200x1xf32> to vector<1x200x1xf32>
    %cst_13 = arith.constant dense<0.000000e+00> : vector<1xf32>
    %42 = vector.multi_reduction <add>, %41, %cst_13 [1, 2] : vector<1x200x1xf32> to vector<1xf32>
    %43 = vector.shape_cast %42 : vector<1xf32> to vector<1x1x1xf32>
    %44 = vector.extract %43[0, 0, 0] : f32 from vector<1x1x1xf32>
    %45 = vector.shape_cast %36 : vector<200x1xf32> to vector<1x200x1xf32>
    %cst_14 = arith.constant dense<0.000000e+00> : vector<1xf32>
    %46 = vector.multi_reduction <add>, %45, %cst_14 [1, 2] : vector<1x200x1xf32> to vector<1xf32>
    %47 = vector.shape_cast %46 : vector<1xf32> to vector<1x1x1xf32>
    %48 = vector.extract %47[0, 0, 0] : f32 from vector<1x1x1xf32>
    %49 = arith.mulf %32, %36 : vector<200x1xf32>
    %50 = vector.shape_cast %49 : vector<200x1xf32> to vector<1x200x1xf32>
    %cst_15 = arith.constant dense<0.000000e+00> : vector<1xf32>
    %51 = vector.multi_reduction <add>, %50, %cst_15 [1, 2] : vector<1x200x1xf32> to vector<1xf32>
    %52 = vector.shape_cast %51 : vector<1xf32> to vector<1x1x1xf32>
    %53 = vector.extract %52[0, 0, 0] : f32 from vector<1x1x1xf32>
    %54 = tpu.iota {dimensions = array<i32: 2>} : vector<1x1x128xi32>
    %c0_i32 = arith.constant 0 : i32
    %55 = vector.broadcast %c0_i32 : i32 to vector<1x1x128xi32>
    %56 = arith.cmpi eq, %54, %55 : vector<1x1x128xi32>
    %cst_16 = arith.constant 0.000000e+00 : f32
    %57 = vector.broadcast %40 : f32 to vector<1x1x128xf32>
    %58 = vector.broadcast %cst_16 : f32 to vector<1x1x128xf32>
    %59 = arith.select %56, %57, %58 : vector<1x1x128xi1>, vector<1x1x128xf32>
    %c1_i32 = arith.constant 1 : i32
    %60 = vector.broadcast %c1_i32 : i32 to vector<1x1x128xi32>
    %61 = arith.cmpi eq, %54, %60 : vector<1x1x128xi32>
    %cst_17 = arith.constant 0.000000e+00 : f32
    %62 = vector.broadcast %44 : f32 to vector<1x1x128xf32>
    %63 = vector.broadcast %cst_17 : f32 to vector<1x1x128xf32>
    %64 = arith.select %61, %62, %63 : vector<1x1x128xi1>, vector<1x1x128xf32>
    %65 = arith.addf %59, %64 : vector<1x1x128xf32>
    %c2_i32 = arith.constant 2 : i32
    %66 = vector.broadcast %c2_i32 : i32 to vector<1x1x128xi32>
    %67 = arith.cmpi eq, %54, %66 : vector<1x1x128xi32>
    %cst_18 = arith.constant 0.000000e+00 : f32
    %68 = vector.broadcast %48 : f32 to vector<1x1x128xf32>
    %69 = vector.broadcast %cst_18 : f32 to vector<1x1x128xf32>
    %70 = arith.select %67, %68, %69 : vector<1x1x128xi1>, vector<1x1x128xf32>
    %71 = arith.addf %65, %70 : vector<1x1x128xf32>
    %c3_i32 = arith.constant 3 : i32
    %72 = vector.broadcast %c3_i32 : i32 to vector<1x1x128xi32>
    %73 = arith.cmpi eq, %54, %72 : vector<1x1x128xi32>
    %cst_19 = arith.constant 0.000000e+00 : f32
    %74 = vector.broadcast %53 : f32 to vector<1x1x128xf32>
    %75 = vector.broadcast %cst_19 : f32 to vector<1x1x128xf32>
    %76 = arith.select %73, %74, %75 : vector<1x1x128xi1>, vector<1x1x128xf32>
    %77 = arith.addf %71, %76 : vector<1x1x128xf32>
    %c0_i32_20 = arith.constant 0 : i32
    %78 = arith.cmpi eq, %arg1, %c0_i32_20 : i32
    %79 = arith.extui %78 : i1 to i32
    %c0_i32_21 = arith.constant 0 : i32
    %80 = arith.cmpi ne, %79, %c0_i32_21 : i32
    scf.if %80 {
      %cst_28 = arith.constant 0.000000e+00 : f32
      %84 = vector.broadcast %cst_28 : f32 to vector<1x1x128xf32>
      %c0_29 = arith.constant 0 : index
      %c0_30 = arith.constant 0 : index
      %c0_31 = arith.constant 0 : index
      %85 = vector.load %arg6[%c0_29, %c0_30, %c0_31] : memref<1x1x128xf32, #tpu.memory_space<vmem>>, vector<1x1x128xf32>
      tpu.vector_store %arg6[%c0_29, %c0_30, %c0_31], %84 {strides = array<i32>} : memref<1x1x128xf32, #tpu.memory_space<vmem>>, vector<1x1x128xf32>,
    } else {
    }
    %c0_22 = arith.constant 0 : index
    %c0_23 = arith.constant 0 : index
    %c0_24 = arith.constant 0 : index
    %81 = vector.load %arg6[%c0_22, %c0_23, %c0_24] : memref<1x1x128xf32, #tpu.memory_space<vmem>>, vector<1x1x128xf32>
    %82 = arith.addf %81, %77 : vector<1x1x128xf32>
    %c0_25 = arith.constant 0 : index
    %c0_26 = arith.constant 0 : index
    %c0_27 = arith.constant 0 : index
    %83 = vector.load %arg6[%c0_25, %c0_26, %c0_27] : memref<1x1x128xf32, #tpu.memory_space<vmem>>, vector<1x1x128xf32>
    tpu.vector_store %arg6[%c0_25, %c0_26, %c0_27], %82 {strides = array<i32>} : memref<1x1x128xf32, #tpu.memory_space<vmem>>, vector<1x1x128xf32>,
    return
  }
  func.func @transform_0(%arg0: i32, %arg1: i32) -> (i32, i32) {
    %c1_i32 = arith.constant 1 : i32
    %0 = arith.muli %arg0, %c1_i32 : i32
    %1 = arith.addi %0, %arg1 : i32
    %c0_i32 = arith.constant 0 : i32
    %c0_i32_0 = arith.constant 0 : i32
    return %1, %c0_i32 : i32, i32
  }
  func.func @transform_1(%arg0: i32, %arg1: i32) -> (i32, i32) {
    %c0_i32 = arith.constant 0 : i32
    %c0_i32_0 = arith.constant 0 : i32
    %c0_i32_1 = arith.constant 0 : i32
    return %c0_i32, %c0_i32_0 : i32, i32
  }
  func.func @transform_2(%arg0: i32, %arg1: i32) -> (i32, i32) {
    %c1_i32 = arith.constant 1 : i32
    %0 = arith.muli %arg0, %c1_i32 : i32
    %1 = arith.addi %0, %arg1 : i32
    %c0_i32 = arith.constant 0 : i32
    %c0_i32_0 = arith.constant 0 : i32
    return %1, %c0_i32 : i32, i32
  }
  func.func @transform_3(%arg0: i32, %arg1: i32) -> i32 {
    %c0_i32 = arith.constant 0 : i32
    %c0_i32_0 = arith.constant 0 : i32
    return %c0_i32 : i32
  }
  func.func @transform_4(%arg0: i32, %arg1: i32) -> (i32, i32, i32) {
    %c0_i32 = arith.constant 0 : i32
    %c0_i32_0 = arith.constant 0 : i32
    %c0_i32_1 = arith.constant 0 : i32
    return %arg0, %c0_i32, %c0_i32_0 : i32, i32, i32
  }
}

</mosaic_0001>

<llo_original>
// kernel: tpu_custom_call.1
$region0: #{tpu_custom_call.1}
  #allocation0 [shape = 'u32[]', space=smem, size = 0x4, offset = 0x4, fixed_abs, tag = 'smem constant byte address 0x4 - core index']
  #allocation1 [shape = 'u32[72,128]{1,0:T(1,128)}', space=vmem, size = 0x9000, scoped, tag = 'internal scratch']
  %s0 = inlined_call_operand.vmem [shape: f32[200,64], index: 0, kind: input, shape index: {}]
  %s1 = inlined_call_operand.vmem [shape: f32[64,1], index: 1, kind: input, shape index: {}]
  %s2 = inlined_call_operand.vmem [shape: f32[200,1], index: 2, kind: input, shape index: {}]
  %s3 = inlined_call_operand.vmem [shape: f32[3], index: 3, kind: input, shape index: {}]
  %s4 = inlined_call_operand.hbm [shape: f32[1,1,128], index: 4, kind: output, shape index: {}]
  %s5 = sld [smem:[#allocation0]]
  $region34: #{tpu_custom_call.1} parent=0
    _
  %s7 = ssub.s32 1, %s5
  %s8 = scalar_select 0, %s7, %s5
  $region1: #{tpu_custom_call.1} parent=0
    #allocation2 [shape = 'u8[512]{0}', space=smem, size = 0x200, scoped, tag = 'input window, operand 3, single buffered']
    #allocation3 [shape = 's32[1]{0}', space=sflag, size = 0x4, scoped, tag = 'scoped memory for tpu_custom_call.1']
    #allocation4 [shape = 's32[1]{0}', space=sflag, size = 0x4, scoped, tag = 'scoped memory for tpu_custom_call.1']
    #allocation5 [shape = 'u8[512]{0}', space=vmem, size = 0x400, scoped, tag = 'output window, operand 0, single buffered']
    %9 = vsyncpa [#allocation4], 0
    %10 = vsyncpa [#allocation3], 0
    // Predicated region
    $region2: #{tpu_custom_call.1} parent=1 // pred_check
      _
    $region3: #{tpu_custom_call.1} parent=1 // pred_check_branch
      %12 = sbr.rel (0) target = $region5
    $region4: #{tpu_custom_call.1} parent=1 // pred_region
      %s13 = sadd.s32 0, 0
      %s14 = smul.u32 25, %s13
      %p15 = scmp.lt.s32.totalorder %s14, 24
      %s16 = scalar_select %p15, %s14, 24
      %s17 = smul.addr %s16, 8
      %s18 = scalar_lea.vmem %s0, %s17
      %s19 = sadd.s32 0, 0
      %s20 = smul.u32 25, %s19
    $region5: #{tpu_custom_call.1} parent=1 // pred_fallthru
      _
    // Predicated region
    $region6: #{tpu_custom_call.1} parent=1 // pred_check
      _
    $region7: #{tpu_custom_call.1} parent=1 // pred_check_branch
      %22 = sbr.rel (0) target = $region9
    $region8: #{tpu_custom_call.1} parent=1 // pred_region
      _
    $region9: #{tpu_custom_call.1} parent=1 // pred_fallthru
      _
    // Predicated region
    $region10: #{tpu_custom_call.1} parent=1 // pred_check
      _
    $region11: #{tpu_custom_call.1} parent=1 // pred_check_branch
      %24 = sbr.rel (0) target = $region13
    $region12: #{tpu_custom_call.1} parent=1 // pred_region
      %s25 = sadd.s32 0, 0
      %s26 = smul.u32 25, %s25
      %p27 = scmp.lt.s32.totalorder %s26, 24
      %s28 = scalar_select %p27, %s26, 24
      %s29 = smul.addr %s28, 8
      %s30 = scalar_lea.vmem %s2, %s29
      %s31 = sadd.s32 0, 0
      %s32 = smul.u32 25, %s31
    $region13: #{tpu_custom_call.1} parent=1 // pred_fallthru
      _
    // Predicated region
    $region14: #{tpu_custom_call.1} parent=1 // pred_check
      _
    $region15: #{tpu_custom_call.1} parent=1 // pred_check_branch
      %34 = sbr.rel (0) target = $region17
    $region16: #{tpu_custom_call.1} parent=1 // pred_region
      %36 = vsyncadd [#allocation4], 0
      %s38 = sshll.u32 %s3, 4
      %s39 = int_to_ptr.vmem [resolvable:$true] %s38
      %41 = dma.vmem_to_smem %s39, 16, [#allocation2], [#allocation4]
    $region17: #{tpu_custom_call.1} parent=1 // pred_fallthru
      _
    // Predicated region
    $region18: #{tpu_custom_call.1} parent=1 // pred_check
      _
    $region19: #{tpu_custom_call.1} parent=1 // pred_check_branch
      %43 = sbr.rel (0) target = $region21
    $region20: #{tpu_custom_call.1} parent=1 // pred_region
      %45 = dma.done [#allocation4], 16
    $region21: #{tpu_custom_call.1} parent=1 // pred_fallthru
      _
    %46 = sfence
    %s47 = sadd.s32 0, 0
    %s48 = smul.u32 25, %s47
    %p49 = scmp.lt.s32.totalorder %s48, 24
    %s50 = scalar_select %p49, %s48, 24
    %s51 = smul.addr %s50, 8
    %s52 = scalar_lea.vmem %s0, %s51
    %s53 = sadd.s32 0, 0
    %s54 = smul.u32 25, %s53
    %p55 = scmp.lt.s32.totalorder %s54, 24
    %s56 = scalar_select %p55, %s54, 24
    %s57 = smul.addr %s56, 8
    %s58 = scalar_lea.vmem %s2, %s57
    %s59 = sadd.s32 0, 0
    %s60 = smul.u32 25, %s59
    %p61 = scmp.lt.s32.totalorder %s60, 24
    %s62 = scalar_select %p61, %s60, 24
    %s63 = smul.addr %s62, 8
    %s64 = scalar_lea.vmem %s0, %s63
    %s65 = sadd.s32 0, 0
    %s66 = smul.u32 25, %s65
    %s67 = sadd.s32 0, 0
    %s68 = smul.u32 25, %s67
    %p69 = scmp.lt.s32.totalorder %s68, 24
    %s70 = scalar_select %p69, %s68, 24
    %s71 = smul.addr %s70, 8
    %s72 = scalar_lea.vmem %s2, %s71
    %s73 = sadd.s32 0, 0
    %s74 = smul.u32 25, %s73
    %s75 = sld [smem:[#allocation2]]
    %s76 = sld [smem:[#allocation2 + $0x1]]
    %s77 = sld [smem:[#allocation2 + $0x2]]
    %v78 = vld [vmem:[%s64] sm:$0xff]
    %v79 = vld [vmem:[%s64 + $0x8] sm:$0xff]
    %v80 = vld [vmem:[%s64 + $0x10] sm:$0xff]
    %v81 = vld [vmem:[%s64 + $0x18] sm:$0xff]
    %v82 = vld [vmem:[%s64 + $0x20] sm:$0xff]
    %v83 = vld [vmem:[%s64 + $0x28] sm:$0xff]
    %v84 = vld [vmem:[%s64 + $0x30] sm:$0xff]
    %v85 = vld [vmem:[%s64 + $0x38] sm:$0xff]
    %v86 = vld [vmem:[%s64 + $0x40] sm:$0xff]
    %v87 = vld [vmem:[%s64 + $0x48] sm:$0xff]
    %v88 = vld [vmem:[%s64 + $0x50] sm:$0xff]
    %v89 = vld [vmem:[%s64 + $0x58] sm:$0xff]
    %v90 = vld [vmem:[%s64 + $0x60] sm:$0xff]
    %v91 = vld [vmem:[%s64 + $0x68] sm:$0xff]
    %v92 = vld [vmem:[%s64 + $0x70] sm:$0xff]
    %v93 = vld [vmem:[%s64 + $0x78] sm:$0xff]
    %v94 = vld [vmem:[%s64 + $0x80] sm:$0xff]
    %v95 = vld [vmem:[%s64 + $0x88] sm:$0xff]
    %v96 = vld [vmem:[%s64 + $0x90] sm:$0xff]
    %v97 = vld [vmem:[%s64 + $0x98] sm:$0xff]
    %v98 = vld [vmem:[%s64 + $0xa0] sm:$0xff]
    %v99 = vld [vmem:[%s64 + $0xa8] sm:$0xff]
    %v100 = vld [vmem:[%s64 + $0xb0] sm:$0xff]
    %v101 = vld [vmem:[%s64 + $0xb8] sm:$0xff]
    %v102 = vld [vmem:[%s64 + $0xc0] sm:$0xff]
    %v103 = vld [vmem:[%s1] sm:$0xff]
    %v104 = vld [vmem:[%s1 + $0x8] sm:$0xff]
    %v105 = vld [vmem:[%s1 + $0x10] sm:$0xff]
    %v106 = vld [vmem:[%s1 + $0x18] sm:$0xff]
    %v107 = vld [vmem:[%s1 + $0x20] sm:$0xff]
    %v108 = vld [vmem:[%s1 + $0x28] sm:$0xff]
    %v109 = vld [vmem:[%s1 + $0x30] sm:$0xff]
    %v110 = vld [vmem:[%s1 + $0x38] sm:$0xff]
    %v111 = vstv %s75
    %vm112 = vcmask 523264
    %v114 = vsel %vm112, %v78, 0
    %v117 = vsel %vm112, %v79, 0
    %v120 = vsel %vm112, %v80, 0
    %v123 = vsel %vm112, %v81, 0
    %v126 = vsel %vm112, %v82, 0
    %v129 = vsel %vm112, %v83, 0
    %v132 = vsel %vm112, %v84, 0
    %v135 = vsel %vm112, %v85, 0
    %v138 = vsel %vm112, %v86, 0
    %v141 = vsel %vm112, %v87, 0
    %v144 = vsel %vm112, %v88, 0
    %v147 = vsel %vm112, %v89, 0
    %v150 = vsel %vm112, %v90, 0
    %v153 = vsel %vm112, %v91, 0
    %v156 = vsel %vm112, %v92, 0
    %v159 = vsel %vm112, %v93, 0
    %v162 = vsel %vm112, %v94, 0
    %v165 = vsel %vm112, %v95, 0
    %v168 = vsel %vm112, %v96, 0
    %v171 = vsel %vm112, %v97, 0
    %v174 = vsel %vm112, %v98, 0
    %v177 = vsel %vm112, %v99, 0
    %v180 = vsel %vm112, %v100, 0
    %v183 = vsel %vm112, %v101, 0
    %v186 = vsel %vm112, %v102, 0
    %188 = vmatpush.msra.mxu0 0.0
    %189 = vmatpush.msra.mxu0 0.0
    %190 = vmatpush.msra.mxu0 0.0
    %191 = vmatpush.msra.mxu0 0.0
    %192 = vmatpush.msra.mxu0 0.0
    %193 = vmatpush.msra.mxu0 0.0
    %194 = vmatpush.msra.mxu0 0.0
    %195 = vmatpush.msra.mxu0 0.0
    %196 = vmatpush.msra.mxu0 %v110
    %197 = vmatpush.msra.mxu0 %v109
    %198 = vmatpush.msra.mxu0 %v108
    %199 = vmatpush.msra.mxu0 %v107
    %200 = vmatpush.msra.mxu0 %v106
    %201 = vmatpush.msra.mxu0 %v105
    %202 = vmatpush.msra.mxu0 %v104
    %203 = vmatpush.msra.mxu0 %v103
    %204 = vmatmul.f32.gmra.mxu0 %v114
    %v205 = vpop.f32.mrf.mxu0
    %v206 = vadd.f32 %v111, %v205
    %207 = vmatmul.f32.gmra.mxu0 %v117
    %v208 = vpop.f32.mrf.mxu0
    %v209 = vadd.f32 %v111, %v208
    %210 = vmatmul.f32.gmra.mxu0 %v120
    %v211 = vpop.f32.mrf.mxu0
    %v212 = vadd.f32 %v111, %v211
    %213 = vmatmul.f32.gmra.mxu0 %v123
    %v214 = vpop.f32.mrf.mxu0
    %v215 = vadd.f32 %v111, %v214
    %216 = vmatmul.f32.gmra.mxu0 %v126
    %v217 = vpop.f32.mrf.mxu0
    %v218 = vadd.f32 %v111, %v217
    %219 = vmatmul.f32.gmra.mxu0 %v129
    %v220 = vpop.f32.mrf.mxu0
    %v221 = vadd.f32 %v111, %v220
    %222 = vmatmul.f32.gmra.mxu0 %v132
    %v223 = vpop.f32.mrf.mxu0
    %v224 = vadd.f32 %v111, %v223
    %225 = vmatmul.f32.gmra.mxu0 %v135
    %v226 = vpop.f32.mrf.mxu0
    %v227 = vadd.f32 %v111, %v226
    %228 = vmatmul.f32.gmra.mxu0 %v138
    %v229 = vpop.f32.mrf.mxu0
    %v230 = vadd.f32 %v111, %v229
    %231 = vmatmul.f32.gmra.mxu0 %v141
    %v232 = vpop.f32.mrf.mxu0
    %v233 = vadd.f32 %v111, %v232
    %234 = vmatmul.f32.gmra.mxu0 %v144
    %v235 = vpop.f32.mrf.mxu0
    %v236 = vadd.f32 %v111, %v235
    %237 = vmatmul.f32.gmra.mxu0 %v147
    %v238 = vpop.f32.mrf.mxu0
    %v239 = vadd.f32 %v111, %v238
    %240 = vmatmul.f32.gmra.mxu0 %v150
    %v241 = vpop.f32.mrf.mxu0
    %v242 = vadd.f32 %v111, %v241
    %243 = vmatmul.f32.gmra.mxu0 %v153
    %v244 = vpop.f32.mrf.mxu0
    %v245 = vadd.f32 %v111, %v244
    %246 = vmatmul.f32.gmra.mxu0 %v156
    %v247 = vpop.f32.mrf.mxu0
    %v248 = vadd.f32 %v111, %v247
    %249 = vmatmul.f32.gmra.mxu0 %v159
    %v250 = vpop.f32.mrf.mxu0
    %v251 = vadd.f32 %v111, %v250
    %252 = vmatmul.f32.gmra.mxu0 %v162
    %v253 = vpop.f32.mrf.mxu0
    %v254 = vadd.f32 %v111, %v253
    %255 = vmatmul.f32.gmra.mxu0 %v165
    %v256 = vpop.f32.mrf.mxu0
    %v257 = vadd.f32 %v111, %v256
    %258 = vmatmul.f32.gmra.mxu0 %v168
    %v259 = vpop.f32.mrf.mxu0
    %v260 = vadd.f32 %v111, %v259
    %261 = vmatmul.f32.gmra.mxu0 %v171
    %v262 = vpop.f32.mrf.mxu0
    %v263 = vadd.f32 %v111, %v262
    %264 = vmatmul.f32.gmra.mxu0 %v174
    %v265 = vpop.f32.mrf.mxu0
    %v266 = vadd.f32 %v111, %v265
    %267 = vmatmul.f32.gmra.mxu0 %v177
    %v268 = vpop.f32.mrf.mxu0
    %v269 = vadd.f32 %v111, %v268
    %270 = vmatmul.f32.gmra.mxu0 %v180
    %v271 = vpop.f32.mrf.mxu0
    %v272 = vadd.f32 %v111, %v271
    %273 = vmatmul.f32.gmra.mxu0 %v183
    %v274 = vpop.f32.mrf.mxu0
    %v275 = vadd.f32 %v111, %v274
    %276 = vmatmul.f32.gmra.mxu0 %v186
    %v277 = vpop.f32.mrf.mxu0
    %v278 = vadd.f32 %v111, %v277
    %279 = vdwg.mxu0
    %v280 = vld [vmem:[%s72] sm:$0xff]
    %v281 = vld [vmem:[%s72 + $0x8] sm:$0xff]
    %v282 = vld [vmem:[%s72 + $0x10] sm:$0xff]
    %v283 = vld [vmem:[%s72 + $0x18] sm:$0xff]
    %v284 = vld [vmem:[%s72 + $0x20] sm:$0xff]
    %v285 = vld [vmem:[%s72 + $0x28] sm:$0xff]
    %v286 = vld [vmem:[%s72 + $0x30] sm:$0xff]
    %v287 = vld [vmem:[%s72 + $0x38] sm:$0xff]
    %v288 = vld [vmem:[%s72 + $0x40] sm:$0xff]
    %v289 = vld [vmem:[%s72 + $0x48] sm:$0xff]
    %v290 = vld [vmem:[%s72 + $0x50] sm:$0xff]
    %v291 = vld [vmem:[%s72 + $0x58] sm:$0xff]
    %v292 = vld [vmem:[%s72 + $0x60] sm:$0xff]
    %v293 = vld [vmem:[%s72 + $0x68] sm:$0xff]
    %v294 = vld [vmem:[%s72 + $0x70] sm:$0xff]
    %v295 = vld [vmem:[%s72 + $0x78] sm:$0xff]
    %v296 = vld [vmem:[%s72 + $0x80] sm:$0xff]
    %v297 = vld [vmem:[%s72 + $0x88] sm:$0xff]
    %v298 = vld [vmem:[%s72 + $0x90] sm:$0xff]
    %v299 = vld [vmem:[%s72 + $0x98] sm:$0xff]
    %v300 = vld [vmem:[%s72 + $0xa0] sm:$0xff]
    %v301 = vld [vmem:[%s72 + $0xa8] sm:$0xff]
    %v302 = vld [vmem:[%s72 + $0xb0] sm:$0xff]
    %v303 = vld [vmem:[%s72 + $0xb8] sm:$0xff]
    %v304 = vld [vmem:[%s72 + $0xc0] sm:$0xff]
    %v305 = vsub.f32 0.0, %v206
    %v306 = vsub.f32 0.0, %v209
    %v307 = vsub.f32 0.0, %v212
    %v308 = vsub.f32 0.0, %v215
    %v309 = vsub.f32 0.0, %v218
    %v310 = vsub.f32 0.0, %v221
    %v311 = vsub.f32 0.0, %v224
    %v312 = vsub.f32 0.0, %v227
    %v313 = vsub.f32 0.0, %v230
    %v314 = vsub.f32 0.0, %v233
    %v315 = vsub.f32 0.0, %v236
    %v316 = vsub.f32 0.0, %v239
    %v317 = vsub.f32 0.0, %v242
    %v318 = vsub.f32 0.0, %v245
    %v319 = vsub.f32 0.0, %v248
    %v320 = vsub.f32 0.0, %v251
    %v321 = vsub.f32 0.0, %v254
    %v322 = vsub.f32 0.0, %v257
    %v323 = vsub.f32 0.0, %v260
    %v324 = vsub.f32 0.0, %v263
    %v325 = vsub.f32 0.0, %v266
    %v326 = vsub.f32 0.0, %v269
    %v327 = vsub.f32 0.0, %v272
    %v328 = vsub.f32 0.0, %v275
    %v329 = vsub.f32 0.0, %v278
    %v330 = vmax.f32 %v305, 0.0
    %v331 = vmax.f32 %v306, 0.0
    %v332 = vmax.f32 %v307, 0.0
    %v333 = vmax.f32 %v308, 0.0
    %v334 = vmax.f32 %v309, 0.0
    %v335 = vmax.f32 %v310, 0.0
    %v336 = vmax.f32 %v311, 0.0
    %v337 = vmax.f32 %v312, 0.0
    %v338 = vmax.f32 %v313, 0.0
    %v339 = vmax.f32 %v314, 0.0
    %v340 = vmax.f32 %v315, 0.0
    %v341 = vmax.f32 %v316, 0.0
    %v342 = vmax.f32 %v317, 0.0
    %v343 = vmax.f32 %v318, 0.0
    %v344 = vmax.f32 %v319, 0.0
    %v345 = vmax.f32 %v320, 0.0
    %v346 = vmax.f32 %v321, 0.0
    %v347 = vmax.f32 %v322, 0.0
    %v348 = vmax.f32 %v323, 0.0
    %v349 = vmax.f32 %v324, 0.0
    %v350 = vmax.f32 %v325, 0.0
    %v351 = vmax.f32 %v326, 0.0
    %v352 = vmax.f32 %v327, 0.0
    %v353 = vmax.f32 %v328, 0.0
    %v354 = vmax.f32 %v329, 0.0
    %v355 = vand.u32 2147483647, %v206
    %v356 = vand.u32 2147483647, %v209
    %v357 = vand.u32 2147483647, %v212
    %v358 = vand.u32 2147483647, %v215
    %v359 = vand.u32 2147483647, %v218
    %v360 = vand.u32 2147483647, %v221
    %v361 = vand.u32 2147483647, %v224
    %v362 = vand.u32 2147483647, %v227
    %v363 = vand.u32 2147483647, %v230
    %v364 = vand.u32 2147483647, %v233
    %v365 = vand.u32 2147483647, %v236
    %v366 = vand.u32 2147483647, %v239
    %v367 = vand.u32 2147483647, %v242
    %v368 = vand.u32 2147483647, %v245
    %v369 = vand.u32 2147483647, %v248
    %v370 = vand.u32 2147483647, %v251
    %v371 = vand.u32 2147483647, %v254
    %v372 = vand.u32 2147483647, %v257
    %v373 = vand.u32 2147483647, %v260
    %v374 = vand.u32 2147483647, %v263
    %v375 = vand.u32 2147483647, %v266
    %v376 = vand.u32 2147483647, %v269
    %v377 = vand.u32 2147483647, %v272
    %v378 = vand.u32 2147483647, %v275
    %v379 = vand.u32 2147483647, %v278
    %v380 = vsub.f32 0.0, %v355
    %v381 = vsub.f32 0.0, %v356
    %v382 = vsub.f32 0.0, %v357
    %v383 = vsub.f32 0.0, %v358
    %v384 = vsub.f32 0.0, %v359
    %v385 = vsub.f32 0.0, %v360
    %v386 = vsub.f32 0.0, %v361
    %v387 = vsub.f32 0.0, %v362
    %v388 = vsub.f32 0.0, %v363
    %v389 = vsub.f32 0.0, %v364
    %v390 = vsub.f32 0.0, %v365
    %v391 = vsub.f32 0.0, %v366
    %v392 = vsub.f32 0.0, %v367
    %v393 = vsub.f32 0.0, %v368
    %v394 = vsub.f32 0.0, %v369
    %v395 = vsub.f32 0.0, %v370
    %v396 = vsub.f32 0.0, %v371
    %v397 = vsub.f32 0.0, %v372
    %v398 = vsub.f32 0.0, %v373
    %v399 = vsub.f32 0.0, %v374
    %v400 = vsub.f32 0.0, %v375
    %v401 = vsub.f32 0.0, %v376
    %v402 = vsub.f32 0.0, %v377
    %v403 = vsub.f32 0.0, %v378
    %v404 = vsub.f32 0.0, %v379
    %v405 = vmul.f32 %v380, 1.442695
    %v406 = vpow.pop %v405
    %v407 = vmul.f32 %v381, 1.442695
    %v408 = vpow.pop %v407
    %v409 = vmul.f32 %v382, 1.442695
    %v410 = vpow.pop %v409
    %v411 = vmul.f32 %v383, 1.442695
    %v412 = vpow.pop %v411
    %v413 = vmul.f32 %v384, 1.442695
    %v414 = vpow.pop %v413
    %v415 = vmul.f32 %v385, 1.442695
    %v416 = vpow.pop %v415
    %v417 = vmul.f32 %v386, 1.442695
    %v418 = vpow.pop %v417
    %v419 = vmul.f32 %v387, 1.442695
    %v420 = vpow.pop %v419
    %v421 = vmul.f32 %v388, 1.442695
    %v422 = vpow.pop %v421
    %v423 = vmul.f32 %v389, 1.442695
    %v424 = vpow.pop %v423
    %v425 = vmul.f32 %v390, 1.442695
    %v426 = vpow.pop %v425
    %v427 = vmul.f32 %v391, 1.442695
    %v428 = vpow.pop %v427
    %v429 = vmul.f32 %v392, 1.442695
    %v430 = vpow.pop %v429
    %v431 = vmul.f32 %v393, 1.442695
    %v432 = vpow.pop %v431
    %v433 = vmul.f32 %v394, 1.442695
    %v434 = vpow.pop %v433
    %v435 = vmul.f32 %v395, 1.442695
    %v436 = vpow.pop %v435
    %v437 = vmul.f32 %v396, 1.442695
    %v438 = vpow.pop %v437
    %v439 = vmul.f32 %v397, 1.442695
    %v440 = vpow.pop %v439
    %v441 = vmul.f32 %v398, 1.442695
    %v442 = vpow.pop %v441
    %v443 = vmul.f32 %v399, 1.442695
    %v444 = vpow.pop %v443
    %v445 = vmul.f32 %v400, 1.442695
    %v446 = vpow.pop %v445
    %v447 = vmul.f32 %v401, 1.442695
    %v448 = vpow.pop %v447
    %v449 = vmul.f32 %v402, 1.442695
    %v450 = vpow.pop %v449
    %v451 = vmul.f32 %v403, 1.442695
    %v452 = vpow.pop %v451
    %v453 = vmul.f32 %v404, 1.442695
    %v454 = vpow.pop %v453
    %v455 = vadd.f32 %v406, 1.0
    %v456 = vadd.f32 %v408, 1.0
    %v457 = vadd.f32 %v410, 1.0
    %v458 = vadd.f32 %v412, 1.0
    %v459 = vadd.f32 %v414, 1.0
    %v460 = vadd.f32 %v416, 1.0
    %v461 = vadd.f32 %v418, 1.0
    %v462 = vadd.f32 %v420, 1.0
    %v463 = vadd.f32 %v422, 1.0
    %v464 = vadd.f32 %v424, 1.0
    %v465 = vadd.f32 %v426, 1.0
    %v466 = vadd.f32 %v428, 1.0
    %v467 = vadd.f32 %v430, 1.0
    %v468 = vadd.f32 %v432, 1.0
    %v469 = vadd.f32 %v434, 1.0
    %v470 = vadd.f32 %v436, 1.0
    %v471 = vadd.f32 %v438, 1.0
    %v472 = vadd.f32 %v440, 1.0
    %v473 = vadd.f32 %v442, 1.0
    %v474 = vadd.f32 %v444, 1.0
    %v475 = vadd.f32 %v446, 1.0
    %v476 = vadd.f32 %v448, 1.0
    %v477 = vadd.f32 %v450, 1.0
    %v478 = vadd.f32 %v452, 1.0
    %v479 = vadd.f32 %v454, 1.0
    %v480 = vlog2.pop %v455
    %v481 = vmul.f32 %v480, 0.6931472
    %v482 = vlog2.pop %v456
    %v483 = vmul.f32 %v482, 0.6931472
    %v484 = vlog2.pop %v457
    %v485 = vmul.f32 %v484, 0.6931472
    %v486 = vlog2.pop %v458
    %v487 = vmul.f32 %v486, 0.6931472
    %v488 = vlog2.pop %v459
    %v489 = vmul.f32 %v488, 0.6931472
    %v490 = vlog2.pop %v460
    %v491 = vmul.f32 %v490, 0.6931472
    %v492 = vlog2.pop %v461
    %v493 = vmul.f32 %v492, 0.6931472
    %v494 = vlog2.pop %v462
    %v495 = vmul.f32 %v494, 0.6931472
    %v496 = vlog2.pop %v463
    %v497 = vmul.f32 %v496, 0.6931472
    %v498 = vlog2.pop %v464
    %v499 = vmul.f32 %v498, 0.6931472
    %v500 = vlog2.pop %v465
    %v501 = vmul.f32 %v500, 0.6931472
    %v502 = vlog2.pop %v466
    %v503 = vmul.f32 %v502, 0.6931472
    %v504 = vlog2.pop %v467
    %v505 = vmul.f32 %v504, 0.6931472
    %v506 = vlog2.pop %v468
    %v507 = vmul.f32 %v506, 0.6931472
    %v508 = vlog2.pop %v469
    %v509 = vmul.f32 %v508, 0.6931472
    %v510 = vlog2.pop %v470
    %v511 = vmul.f32 %v510, 0.6931472
    %v512 = vlog2.pop %v471
    %v513 = vmul.f32 %v512, 0.6931472
    %v514 = vlog2.pop %v472
    %v515 = vmul.f32 %v514, 0.6931472
    %v516 = vlog2.pop %v473
    %v517 = vmul.f32 %v516, 0.6931472
    %v518 = vlog2.pop %v474
    %v519 = vmul.f32 %v518, 0.6931472
    %v520 = vlog2.pop %v475
    %v521 = vmul.f32 %v520, 0.6931472
    %v522 = vlog2.pop %v476
    %v523 = vmul.f32 %v522, 0.6931472
    %v524 = vlog2.pop %v477
    %v525 = vmul.f32 %v524, 0.6931472
    %v526 = vlog2.pop %v478
    %v527 = vmul.f32 %v526, 0.6931472
    %v528 = vlog2.pop %v479
    %v529 = vmul.f32 %v528, 0.6931472
    %v530 = vadd.f32 %v330, %v481
    %v531 = vadd.f32 %v331, %v483
    %v532 = vadd.f32 %v332, %v485
    %v533 = vadd.f32 %v333, %v487
    %v534 = vadd.f32 %v334, %v489
    %v535 = vadd.f32 %v335, %v491
    %v536 = vadd.f32 %v336, %v493
    %v537 = vadd.f32 %v337, %v495
    %v538 = vadd.f32 %v338, %v497
    %v539 = vadd.f32 %v339, %v499
    %v540 = vadd.f32 %v340, %v501
    %v541 = vadd.f32 %v341, %v503
    %v542 = vadd.f32 %v342, %v505
    %v543 = vadd.f32 %v343, %v507
    %v544 = vadd.f32 %v344, %v509
    %v545 = vadd.f32 %v345, %v511
    %v546 = vadd.f32 %v346, %v513
    %v547 = vadd.f32 %v347, %v515
    %v548 = vadd.f32 %v348, %v517
    %v549 = vadd.f32 %v349, %v519
    %v550 = vadd.f32 %v350, %v521
    %v551 = vadd.f32 %v351, %v523
    %v552 = vadd.f32 %v352, %v525
    %v553 = vadd.f32 %v353, %v527
    %v554 = vadd.f32 %v354, %v529
    %v555 = vstv %s76
    %v556 = vmul.f32 %v555, %v280
    %v557 = vmul.f32 %v555, %v281
    %v558 = vmul.f32 %v555, %v282
    %v559 = vmul.f32 %v555, %v283
    %v560 = vmul.f32 %v555, %v284
    %v561 = vmul.f32 %v555, %v285
    %v562 = vmul.f32 %v555, %v286
    %v563 = vmul.f32 %v555, %v287
    %v564 = vmul.f32 %v555, %v288
    %v565 = vmul.f32 %v555, %v289
    %v566 = vmul.f32 %v555, %v290
    %v567 = vmul.f32 %v555, %v291
    %v568 = vmul.f32 %v555, %v292
    %v569 = vmul.f32 %v555, %v293
    %v570 = vmul.f32 %v555, %v294
    %v571 = vmul.f32 %v555, %v295
    %v572 = vmul.f32 %v555, %v296
    %v573 = vmul.f32 %v555, %v297
    %v574 = vmul.f32 %v555, %v298
    %v575 = vmul.f32 %v555, %v299
    %v576 = vmul.f32 %v555, %v300
    %v577 = vmul.f32 %v555, %v301
    %v578 = vmul.f32 %v555, %v302
    %v579 = vmul.f32 %v555, %v303
    %v580 = vmul.f32 %v555, %v304
    %v581 = vmul.f32 %v556, %v530
    %v582 = vmul.f32 %v557, %v531
    %v583 = vmul.f32 %v558, %v532
    %v584 = vmul.f32 %v559, %v533
    %v585 = vmul.f32 %v560, %v534
    %v586 = vmul.f32 %v561, %v535
    %v587 = vmul.f32 %v562, %v536
    %v588 = vmul.f32 %v563, %v537
    %v589 = vmul.f32 %v564, %v538
    %v590 = vmul.f32 %v565, %v539
    %v591 = vmul.f32 %v566, %v540
    %v592 = vmul.f32 %v567, %v541
    %v593 = vmul.f32 %v568, %v542
    %v594 = vmul.f32 %v569, %v543
    %v595 = vmul.f32 %v570, %v544
    %v596 = vmul.f32 %v571, %v545
    %v597 = vmul.f32 %v572, %v546
    %v598 = vmul.f32 %v573, %v547
    %v599 = vmul.f32 %v574, %v548
    %v600 = vmul.f32 %v575, %v549
    %v601 = vmul.f32 %v576, %v550
    %v602 = vmul.f32 %v577, %v551
    %v603 = vmul.f32 %v578, %v552
    %v604 = vmul.f32 %v579, %v553
    %v605 = vmul.f32 %v580, %v554
    %v606 = vsub.f32 1.0, %v280
    %v607 = vsub.f32 1.0, %v281
    %v608 = vsub.f32 1.0, %v282
    %v609 = vsub.f32 1.0, %v283
    %v610 = vsub.f32 1.0, %v284
    %v611 = vsub.f32 1.0, %v285
    %v612 = vsub.f32 1.0, %v286
    %v613 = vsub.f32 1.0, %v287
    %v614 = vsub.f32 1.0, %v288
    %v615 = vsub.f32 1.0, %v289
    %v616 = vsub.f32 1.0, %v290
    %v617 = vsub.f32 1.0, %v291
    %v618 = vsub.f32 1.0, %v292
    %v619 = vsub.f32 1.0, %v293
    %v620 = vsub.f32 1.0, %v294
    %v621 = vsub.f32 1.0, %v295
    %v622 = vsub.f32 1.0, %v296
    %v623 = vsub.f32 1.0, %v297
    %v624 = vsub.f32 1.0, %v298
    %v625 = vsub.f32 1.0, %v299
    %v626 = vsub.f32 1.0, %v300
    %v627 = vsub.f32 1.0, %v301
    %v628 = vsub.f32 1.0, %v302
    %v629 = vsub.f32 1.0, %v303
    %v630 = vsub.f32 1.0, %v304
    %v631 = vadd.f32 %v206, %v530
    %v632 = vadd.f32 %v209, %v531
    %v633 = vadd.f32 %v212, %v532
    %v634 = vadd.f32 %v215, %v533
    %v635 = vadd.f32 %v218, %v534
    %v636 = vadd.f32 %v221, %v535
    %v637 = vadd.f32 %v224, %v536
    %v638 = vadd.f32 %v227, %v537
    %v639 = vadd.f32 %v230, %v538
    %v640 = vadd.f32 %v233, %v539
    %v641 = vadd.f32 %v236, %v540
    %v642 = vadd.f32 %v239, %v541
    %v643 = vadd.f32 %v242, %v542
    %v644 = vadd.f32 %v245, %v543
    %v645 = vadd.f32 %v248, %v544
    %v646 = vadd.f32 %v251, %v545
    %v647 = vadd.f32 %v254, %v546
    %v648 = vadd.f32 %v257, %v547
    %v649 = vadd.f32 %v260, %v548
    %v650 = vadd.f32 %v263, %v549
    %v651 = vadd.f32 %v266, %v550
    %v652 = vadd.f32 %v269, %v551
    %v653 = vadd.f32 %v272, %v552
    %v654 = vadd.f32 %v275, %v553
    %v655 = vadd.f32 %v278, %v554
    %v656 = vmul.f32 %v606, %v631
    %v657 = vmul.f32 %v607, %v632
    %v658 = vmul.f32 %v608, %v633
    %v659 = vmul.f32 %v609, %v634
    %v660 = vmul.f32 %v610, %v635
    %v661 = vmul.f32 %v611, %v636
    %v662 = vmul.f32 %v612, %v637
    %v663 = vmul.f32 %v613, %v638
    %v664 = vmul.f32 %v614, %v639
    %v665 = vmul.f32 %v615, %v640
    %v666 = vmul.f32 %v616, %v641
    %v667 = vmul.f32 %v617, %v642
    %v668 = vmul.f32 %v618, %v643
    %v669 = vmul.f32 %v619, %v644
    %v670 = vmul.f32 %v620, %v645
    %v671 = vmul.f32 %v621, %v646
    %v672 = vmul.f32 %v622, %v647
    %v673 = vmul.f32 %v623, %v648
    %v674 = vmul.f32 %v624, %v649
    %v675 = vmul.f32 %v625, %v650
    %v676 = vmul.f32 %v626, %v651
    %v677 = vmul.f32 %v627, %v652
    %v678 = vmul.f32 %v628, %v653
    %v679 = vmul.f32 %v629, %v654
    %v680 = vmul.f32 %v630, %v655
    %v681 = vadd.f32 %v581, %v656
    %v682 = vadd.f32 %v582, %v657
    %v683 = vadd.f32 %v583, %v658
    %v684 = vadd.f32 %v584, %v659
    %v685 = vadd.f32 %v585, %v660
    %v686 = vadd.f32 %v586, %v661
    %v687 = vadd.f32 %v587, %v662
    %v688 = vadd.f32 %v588, %v663
    %v689 = vadd.f32 %v589, %v664
    %v690 = vadd.f32 %v590, %v665
    %v691 = vadd.f32 %v591, %v666
    %v692 = vadd.f32 %v592, %v667
    %v693 = vadd.f32 %v593, %v668
    %v694 = vadd.f32 %v594, %v669
    %v695 = vadd.f32 %v595, %v670
    %v696 = vadd.f32 %v596, %v671
    %v697 = vadd.f32 %v597, %v672
    %v698 = vadd.f32 %v598, %v673
    %v699 = vadd.f32 %v599, %v674
    %v700 = vadd.f32 %v600, %v675
    %v701 = vadd.f32 %v601, %v676
    %v702 = vadd.f32 %v602, %v677
    %v703 = vadd.f32 %v603, %v678
    %v704 = vadd.f32 %v604, %v679
    %v705 = vadd.f32 %v605, %v680
    %v706 = vstv %s77
    %vm707 = vcmp.gt.f32.partialorder %v206, %v706
    %vm708 = vcmp.gt.f32.partialorder %v209, %v706
    %vm709 = vcmp.gt.f32.partialorder %v212, %v706
    %vm710 = vcmp.gt.f32.partialorder %v215, %v706
    %vm711 = vcmp.gt.f32.partialorder %v218, %v706
    %vm712 = vcmp.gt.f32.partialorder %v221, %v706
    %vm713 = vcmp.gt.f32.partialorder %v224, %v706
    %vm714 = vcmp.gt.f32.partialorder %v227, %v706
    %vm715 = vcmp.gt.f32.partialorder %v230, %v706
    %vm716 = vcmp.gt.f32.partialorder %v233, %v706
    %vm717 = vcmp.gt.f32.partialorder %v236, %v706
    %vm718 = vcmp.gt.f32.partialorder %v239, %v706
    %vm719 = vcmp.gt.f32.partialorder %v242, %v706
    %vm720 = vcmp.gt.f32.partialorder %v245, %v706
    %vm721 = vcmp.gt.f32.partialorder %v248, %v706
    %vm722 = vcmp.gt.f32.partialorder %v251, %v706
    %vm723 = vcmp.gt.f32.partialorder %v254, %v706
    %vm724 = vcmp.gt.f32.partialorder %v257, %v706
    %vm725 = vcmp.gt.f32.partialorder %v260, %v706
    %vm726 = vcmp.gt.f32.partialorder %v263, %v706
    %vm727 = vcmp.gt.f32.partialorder %v266, %v706
    %vm728 = vcmp.gt.f32.partialorder %v269, %v706
    %vm729 = vcmp.gt.f32.partialorder %v272, %v706
    %vm730 = vcmp.gt.f32.partialorder %v275, %v706
    %vm731 = vcmp.gt.f32.partialorder %v278, %v706
    %v732 = vsel %vm707, 1, 0
    %v733 = vsel %vm708, 1, 0
    %v734 = vsel %vm709, 1, 0
    %v735 = vsel %vm710, 1, 0
    %v736 = vsel %vm711, 1, 0
    %v737 = vsel %vm712, 1, 0
    %v738 = vsel %vm713, 1, 0
    %v739 = vsel %vm714, 1, 0
    %v740 = vsel %vm715, 1, 0
    %v741 = vsel %vm716, 1, 0
    %v742 = vsel %vm717, 1, 0
    %v743 = vsel %vm718, 1, 0
    %v744 = vsel %vm719, 1, 0
    %v745 = vsel %vm720, 1, 0
    %v746 = vsel %vm721, 1, 0
    %v747 = vsel %vm722, 1, 0
    %v748 = vsel %vm723, 1, 0
    %v749 = vsel %vm724, 1, 0
    %v750 = vsel %vm725, 1, 0
    %v751 = vsel %vm726, 1, 0
    %v752 = vsel %vm727, 1, 0
    %v753 = vsel %vm728, 1, 0
    %v754 = vsel %vm729, 1, 0
    %v755 = vsel %vm730, 1, 0
    %v756 = vsel %vm731, 1, 0
    %v757 = vcvt.s32.f32 %v732
    %v758 = vcvt.s32.f32 %v733
    %v759 = vcvt.s32.f32 %v734
    %v760 = vcvt.s32.f32 %v735
    %v761 = vcvt.s32.f32 %v736
    %v762 = vcvt.s32.f32 %v737
    %v763 = vcvt.s32.f32 %v738
    %v764 = vcvt.s32.f32 %v739
    %v765 = vcvt.s32.f32 %v740
    %v766 = vcvt.s32.f32 %v741
    %v767 = vcvt.s32.f32 %v742
    %v768 = vcvt.s32.f32 %v743
    %v769 = vcvt.s32.f32 %v744
    %v770 = vcvt.s32.f32 %v745
    %v771 = vcvt.s32.f32 %v746
    %v772 = vcvt.s32.f32 %v747
    %v773 = vcvt.s32.f32 %v748
    %v774 = vcvt.s32.f32 %v749
    %v775 = vcvt.s32.f32 %v750
    %v776 = vcvt.s32.f32 %v751
    %v777 = vcvt.s32.f32 %v752
    %v778 = vcvt.s32.f32 %v753
    %v779 = vcvt.s32.f32 %v754
    %v780 = vcvt.s32.f32 %v755
    %v781 = vcvt.s32.f32 %v756
    %vm782 = vcmp.gt.f32.partialorder %v280, 0.5
    %vm783 = vcmp.gt.f32.partialorder %v281, 0.5
    %vm784 = vcmp.gt.f32.partialorder %v282, 0.5
    %vm785 = vcmp.gt.f32.partialorder %v283, 0.5
    %vm786 = vcmp.gt.f32.partialorder %v284, 0.5
    %vm787 = vcmp.gt.f32.partialorder %v285, 0.5
    %vm788 = vcmp.gt.f32.partialorder %v286, 0.5
    %vm789 = vcmp.gt.f32.partialorder %v287, 0.5
    %vm790 = vcmp.gt.f32.partialorder %v288, 0.5
    %vm791 = vcmp.gt.f32.partialorder %v289, 0.5
    %vm792 = vcmp.gt.f32.partialorder %v290, 0.5
    %vm793 = vcmp.gt.f32.partialorder %v291, 0.5
    %vm794 = vcmp.gt.f32.partialorder %v292, 0.5
    %vm795 = vcmp.gt.f32.partialorder %v293, 0.5
    %vm796 = vcmp.gt.f32.partialorder %v294, 0.5
    %vm797 = vcmp.gt.f32.partialorder %v295, 0.5
    %vm798 = vcmp.gt.f32.partialorder %v296, 0.5
    %vm799 = vcmp.gt.f32.partialorder %v297, 0.5
    %vm800 = vcmp.gt.f32.partialorder %v298, 0.5
    %vm801 = vcmp.gt.f32.partialorder %v299, 0.5
    %vm802 = vcmp.gt.f32.partialorder %v300, 0.5
    %vm803 = vcmp.gt.f32.partialorder %v301, 0.5
    %vm804 = vcmp.gt.f32.partialorder %v302, 0.5
    %vm805 = vcmp.gt.f32.partialorder %v303, 0.5
    %vm806 = vcmp.gt.f32.partialorder %v304, 0.5
    %v807 = vsel %vm782, 1, 0
    %v808 = vsel %vm783, 1, 0
    %v809 = vsel %vm784, 1, 0
    %v810 = vsel %vm785, 1, 0
    %v811 = vsel %vm786, 1, 0
    %v812 = vsel %vm787, 1, 0
    %v813 = vsel %vm788, 1, 0
    %v814 = vsel %vm789, 1, 0
    %v815 = vsel %vm790, 1, 0
    %v816 = vsel %vm791, 1, 0
    %v817 = vsel %vm792, 1, 0
    %v818 = vsel %vm793, 1, 0
    %v819 = vsel %vm794, 1, 0
    %v820 = vsel %vm795, 1, 0
    %v821 = vsel %vm796, 1, 0
    %v822 = vsel %vm797, 1, 0
    %v823 = vsel %vm798, 1, 0
    %v824 = vsel %vm799, 1, 0
    %v825 = vsel %vm800, 1, 0
    %v826 = vsel %vm801, 1, 0
    %v827 = vsel %vm802, 1, 0
    %v828 = vsel %vm803, 1, 0
    %v829 = vsel %vm804, 1, 0
    %v830 = vsel %vm805, 1, 0
    %v831 = vsel %vm806, 1, 0
    %v832 = vcvt.s32.f32 %v807
    %v833 = vcvt.s32.f32 %v808
    %v834 = vcvt.s32.f32 %v809
    %v835 = vcvt.s32.f32 %v810
    %v836 = vcvt.s32.f32 %v811
    %v837 = vcvt.s32.f32 %v812
    %v838 = vcvt.s32.f32 %v813
    %v839 = vcvt.s32.f32 %v814
    %v840 = vcvt.s32.f32 %v815
    %v841 = vcvt.s32.f32 %v816
    %v842 = vcvt.s32.f32 %v817
    %v843 = vcvt.s32.f32 %v818
    %v844 = vcvt.s32.f32 %v819
    %v845 = vcvt.s32.f32 %v820
    %v846 = vcvt.s32.f32 %v821
    %v847 = vcvt.s32.f32 %v822
    %v848 = vcvt.s32.f32 %v823
    %v849 = vcvt.s32.f32 %v824
    %v850 = vcvt.s32.f32 %v825
    %v851 = vcvt.s32.f32 %v826
    %v852 = vcvt.s32.f32 %v827
    %v853 = vcvt.s32.f32 %v828
    %v854 = vcvt.s32.f32 %v829
    %v855 = vcvt.s32.f32 %v830
    %v856 = vcvt.s32.f32 %v831
    %vm857 = vcmask 7168
    %v858 = vsel %vm857, %v681, 0.0
    %v859 = vsel %vm857, %v682, 0.0
    %v860 = vadd.f32 %v858, %v859
    %v861 = vsel %vm857, %v683, 0.0
    %v862 = vadd.f32 %v860, %v861
    %v863 = vsel %vm857, %v684, 0.0
    %v864 = vadd.f32 %v862, %v863
    %v865 = vsel %vm857, %v685, 0.0
    %v866 = vadd.f32 %v864, %v865
    %v867 = vsel %vm857, %v686, 0.0
    %v868 = vadd.f32 %v866, %v867
    %v869 = vsel %vm857, %v687, 0.0
    %v870 = vadd.f32 %v868, %v869
    %v871 = vsel %vm857, %v688, 0.0
    %v872 = vadd.f32 %v870, %v871
    %v873 = vsel %vm857, %v689, 0.0
    %v874 = vadd.f32 %v872, %v873
    %v875 = vsel %vm857, %v690, 0.0
    %v876 = vadd.f32 %v874, %v875
    %v877 = vsel %vm857, %v691, 0.0
    %v878 = vadd.f32 %v876, %v877
    %v879 = vsel %vm857, %v692, 0.0
    %v880 = vadd.f32 %v878, %v879
    %v881 = vsel %vm857, %v693, 0.0
    %v882 = vadd.f32 %v880, %v881
    %v883 = vsel %vm857, %v694, 0.0
    %v884 = vadd.f32 %v882, %v883
    %v885 = vsel %vm857, %v695, 0.0
    %v886 = vadd.f32 %v884, %v885
    %v887 = vsel %vm857, %v696, 0.0
    %v888 = vadd.f32 %v886, %v887
    %v889 = vsel %vm857, %v697, 0.0
    %v890 = vadd.f32 %v888, %v889
    %v891 = vsel %vm857, %v698, 0.0
    %v892 = vadd.f32 %v890, %v891
    %v893 = vsel %vm857, %v699, 0.0
    %v894 = vadd.f32 %v892, %v893
    %v895 = vsel %vm857, %v700, 0.0
    %v896 = vadd.f32 %v894, %v895
    %v897 = vsel %vm857, %v701, 0.0
    %v898 = vadd.f32 %v896, %v897
    %v899 = vsel %vm857, %v702, 0.0
    %v900 = vadd.f32 %v898, %v899
    %v901 = vsel %vm857, %v703, 0.0
    %v902 = vadd.f32 %v900, %v901
    %v903 = vsel %vm857, %v704, 0.0
    %v904 = vadd.f32 %v902, %v903
    %v905 = vsel %vm857, %v705, 0.0
    %v906 = vadd.f32 %v904, %v905
    %907 = vadd.xlane.f32.xlu0 %v906
    %v908 = vpop.xlane.xlu0 %907
    %v909 = vrot.slane %v908, 4
    %v910 = vadd.f32 %v908, %v909
    %v911 = vrot.slane %v910, 2
    %v912 = vadd.f32 %v910, %v911
    %v913 = vrot.slane %v912, 1
    %v914 = vadd.f32 %v912, %v913
    %s915 = vtos %v914
    %v916 = vsel %vm857, %v757, 0.0
    %v917 = vsel %vm857, %v758, 0.0
    %v918 = vadd.f32 %v916, %v917
    %v919 = vsel %vm857, %v759, 0.0
    %v920 = vadd.f32 %v918, %v919
    %v921 = vsel %vm857, %v760, 0.0
    %v922 = vadd.f32 %v920, %v921
    %v923 = vsel %vm857, %v761, 0.0
    %v924 = vadd.f32 %v922, %v923
    %v925 = vsel %vm857, %v762, 0.0
    %v926 = vadd.f32 %v924, %v925
    %v927 = vsel %vm857, %v763, 0.0
    %v928 = vadd.f32 %v926, %v927
    %v929 = vsel %vm857, %v764, 0.0
    %v930 = vadd.f32 %v928, %v929
    %v931 = vsel %vm857, %v765, 0.0
    %v932 = vadd.f32 %v930, %v931
    %v933 = vsel %vm857, %v766, 0.0
    %v934 = vadd.f32 %v932, %v933
    %v935 = vsel %vm857, %v767, 0.0
    %v936 = vadd.f32 %v934, %v935
    %v937 = vsel %vm857, %v768, 0.0
    %v938 = vadd.f32 %v936, %v937
    %v939 = vsel %vm857, %v769, 0.0
    %v940 = vadd.f32 %v938, %v939
    %v941 = vsel %vm857, %v770, 0.0
    %v942 = vadd.f32 %v940, %v941
    %v943 = vsel %vm857, %v771, 0.0
    %v944 = vadd.f32 %v942, %v943
    %v945 = vsel %vm857, %v772, 0.0
    %v946 = vadd.f32 %v944, %v945
    %v947 = vsel %vm857, %v773, 0.0
    %v948 = vadd.f32 %v946, %v947
    %v949 = vsel %vm857, %v774, 0.0
    %v950 = vadd.f32 %v948, %v949
    %v951 = vsel %vm857, %v775, 0.0
    %v952 = vadd.f32 %v950, %v951
    %v953 = vsel %vm857, %v776, 0.0
    %v954 = vadd.f32 %v952, %v953
    %v955 = vsel %vm857, %v777, 0.0
    %v956 = vadd.f32 %v954, %v955
    %v957 = vsel %vm857, %v778, 0.0
    %v958 = vadd.f32 %v956, %v957
    %v959 = vsel %vm857, %v779, 0.0
    %v960 = vadd.f32 %v958, %v959
    %v961 = vsel %vm857, %v780, 0.0
    %v962 = vadd.f32 %v960, %v961
    %v963 = vsel %vm857, %v781, 0.0
    %v964 = vadd.f32 %v962, %v963
    %965 = vadd.xlane.f32.xlu0 %v964
    %v966 = vpop.xlane.xlu0 %965
    %v967 = vrot.slane %v966, 4
    %v968 = vadd.f32 %v966, %v967
    %v969 = vrot.slane %v968, 2
    %v970 = vadd.f32 %v968, %v969
    %v971 = vrot.slane %v970, 1
    %v972 = vadd.f32 %v970, %v971
    %s973 = vtos %v972
    %v974 = vsel %vm857, %v832, 0.0
    %v975 = vsel %vm857, %v833, 0.0
    %v976 = vadd.f32 %v974, %v975
    %v977 = vsel %vm857, %v834, 0.0
    %v978 = vadd.f32 %v976, %v977
    %v979 = vsel %vm857, %v835, 0.0
    %v980 = vadd.f32 %v978, %v979
    %v981 = vsel %vm857, %v836, 0.0
    %v982 = vadd.f32 %v980, %v981
    %v983 = vsel %vm857, %v837, 0.0
    %v984 = vadd.f32 %v982, %v983
    %v985 = vsel %vm857, %v838, 0.0
    %v986 = vadd.f32 %v984, %v985
    %v987 = vsel %vm857, %v839, 0.0
    %v988 = vadd.f32 %v986, %v987
    %v989 = vsel %vm857, %v840, 0.0
    %v990 = vadd.f32 %v988, %v989
    %v991 = vsel %vm857, %v841, 0.0
    %v992 = vadd.f32 %v990, %v991
    %v993 = vsel %vm857, %v842, 0.0
    %v994 = vadd.f32 %v992, %v993
    %v995 = vsel %vm857, %v843, 0.0
    %v996 = vadd.f32 %v994, %v995
    %v997 = vsel %vm857, %v844, 0.0
    %v998 = vadd.f32 %v996, %v997
    %v999 = vsel %vm857, %v845, 0.0
    %v1000 = vadd.f32 %v998, %v999
    %v1001 = vsel %vm857, %v846, 0.0
    %v1002 = vadd.f32 %v1000, %v1001
    %v1003 = vsel %vm857, %v847, 0.0
    %v1004 = vadd.f32 %v1002, %v1003
    %v1005 = vsel %vm857, %v848, 0.0
    %v1006 = vadd.f32 %v1004, %v1005
    %v1007 = vsel %vm857, %v849, 0.0
    %v1008 = vadd.f32 %v1006, %v1007
    %v1009 = vsel %vm857, %v850, 0.0
    %v1010 = vadd.f32 %v1008, %v1009
    %v1011 = vsel %vm857, %v851, 0.0
    %v1012 = vadd.f32 %v1010, %v1011
    %v1013 = vsel %vm857, %v852, 0.0
    %v1014 = vadd.f32 %v1012, %v1013
    %v1015 = vsel %vm857, %v853, 0.0
    %v1016 = vadd.f32 %v1014, %v1015
    %v1017 = vsel %vm857, %v854, 0.0
    %v1018 = vadd.f32 %v1016, %v1017
    %v1019 = vsel %vm857, %v855, 0.0
    %v1020 = vadd.f32 %v1018, %v1019
    %v1021 = vsel %vm857, %v856, 0.0
    %v1022 = vadd.f32 %v1020, %v1021
    %1023 = vadd.xlane.f32.xlu0 %v1022
    %v1024 = vpop.xlane.xlu0 %1023
    %v1025 = vrot.slane %v1024, 4
    %v1026 = vadd.f32 %v1024, %v1025
    %v1027 = vrot.slane %v1026, 2
    %v1028 = vadd.f32 %v1026, %v1027
    %v1029 = vrot.slane %v1028, 1
    %v1030 = vadd.f32 %v1028, %v1029
    %s1031 = vtos %v1030
    %v1032 = vmul.f32 %v757, %v832
    %v1033 = vmul.f32 %v758, %v833
    %v1034 = vmul.f32 %v759, %v834
    %v1035 = vmul.f32 %v760, %v835
    %v1036 = vmul.f32 %v761, %v836
    %v1037 = vmul.f32 %v762, %v837
    %v1038 = vmul.f32 %v763, %v838
    %v1039 = vmul.f32 %v764, %v839
    %v1040 = vmul.f32 %v765, %v840
    %v1041 = vmul.f32 %v766, %v841
    %v1042 = vmul.f32 %v767, %v842
    %v1043 = vmul.f32 %v768, %v843
    %v1044 = vmul.f32 %v769, %v844
    %v1045 = vmul.f32 %v770, %v845
    %v1046 = vmul.f32 %v771, %v846
    %v1047 = vmul.f32 %v772, %v847
    %v1048 = vmul.f32 %v773, %v848
    %v1049 = vmul.f32 %v774, %v849
    %v1050 = vmul.f32 %v775, %v850
    %v1051 = vmul.f32 %v776, %v851
    %v1052 = vmul.f32 %v777, %v852
    %v1053 = vmul.f32 %v778, %v853
    %v1054 = vmul.f32 %v779, %v854
    %v1055 = vmul.f32 %v780, %v855
    %v1056 = vmul.f32 %v781, %v856
    %v1057 = vsel %vm857, %v1032, 0.0
    %v1058 = vsel %vm857, %v1033, 0.0
    %v1059 = vadd.f32 %v1057, %v1058
    %v1060 = vsel %vm857, %v1034, 0.0
    %v1061 = vadd.f32 %v1059, %v1060
    %v1062 = vsel %vm857, %v1035, 0.0
    %v1063 = vadd.f32 %v1061, %v1062
    %v1064 = vsel %vm857, %v1036, 0.0
    %v1065 = vadd.f32 %v1063, %v1064
    %v1066 = vsel %vm857, %v1037, 0.0
    %v1067 = vadd.f32 %v1065, %v1066
    %v1068 = vsel %vm857, %v1038, 0.0
    %v1069 = vadd.f32 %v1067, %v1068
    %v1070 = vsel %vm857, %v1039, 0.0
    %v1071 = vadd.f32 %v1069, %v1070
    %v1072 = vsel %vm857, %v1040, 0.0
    %v1073 = vadd.f32 %v1071, %v1072
    %v1074 = vsel %vm857, %v1041, 0.0
    %v1075 = vadd.f32 %v1073, %v1074
    %v1076 = vsel %vm857, %v1042, 0.0
    %v1077 = vadd.f32 %v1075, %v1076
    %v1078 = vsel %vm857, %v1043, 0.0
    %v1079 = vadd.f32 %v1077, %v1078
    %v1080 = vsel %vm857, %v1044, 0.0
    %v1081 = vadd.f32 %v1079, %v1080
    %v1082 = vsel %vm857, %v1045, 0.0
    %v1083 = vadd.f32 %v1081, %v1082
    %v1084 = vsel %vm857, %v1046, 0.0
    %v1085 = vadd.f32 %v1083, %v1084
    %v1086 = vsel %vm857, %v1047, 0.0
    %v1087 = vadd.f32 %v1085, %v1086
    %v1088 = vsel %vm857, %v1048, 0.0
    %v1089 = vadd.f32 %v1087, %v1088
    %v1090 = vsel %vm857, %v1049, 0.0
    %v1091 = vadd.f32 %v1089, %v1090
    %v1092 = vsel %vm857, %v1050, 0.0
    %v1093 = vadd.f32 %v1091, %v1092
    %v1094 = vsel %vm857, %v1051, 0.0
    %v1095 = vadd.f32 %v1093, %v1094
    %v1096 = vsel %vm857, %v1052, 0.0
    %v1097 = vadd.f32 %v1095, %v1096
    %v1098 = vsel %vm857, %v1053, 0.0
    %v1099 = vadd.f32 %v1097, %v1098
    %v1100 = vsel %vm857, %v1054, 0.0
    %v1101 = vadd.f32 %v1099, %v1100
    %v1102 = vsel %vm857, %v1055, 0.0
    %v1103 = vadd.f32 %v1101, %v1102
    %v1104 = vsel %vm857, %v1056, 0.0
    %v1105 = vadd.f32 %v1103, %v1104
    %1106 = vadd.xlane.f32.xlu0 %v1105
    %v1107 = vpop.xlane.xlu0 %1106
    %v1108 = vrot.slane %v1107, 4
    %v1109 = vadd.f32 %v1107, %v1108
    %v1110 = vrot.slane %v1109, 2
    %v1111 = vadd.f32 %v1109, %v1110
    %v1112 = vrot.slane %v1111, 1
    %v1113 = vadd.f32 %v1111, %v1112
    %s1114 = vtos %v1113
    %v1115 = vlaneseq
    %v1116 = vand.u32 %v1115, 127
    %vm1117 = vcmp.eq.s32.totalorder %v1116, 0
    %v1118 = vstv %s915
    %v1119 = vsel %vm1117, %v1118, 0.0
    %vm1120 = vcmp.eq.s32.totalorder %v1116, 1
    %v1121 = vstv %s973
    %v1122 = vsel %vm1120, %v1121, 0.0
    %v1123 = vadd.f32 %v1119, %v1122
    %vm1124 = vcmp.eq.s32.totalorder %v1116, 2
    %v1125 = vstv %s1031
    %v1126 = vsel %vm1124, %v1125, 0.0
    %v1127 = vadd.f32 %v1123, %v1126
    %vm1128 = vcmp.eq.s32.totalorder %v1116, 3
    %v1129 = vstv %s1114
    %v1130 = vsel %vm1128, %v1129, 0.0
    %v1131 = vadd.f32 %v1127, %v1130
    %p1132 = scmp.eq.s32.totalorder 0, 0
    // Predicated region
    $region22: #{tpu_custom_call.1} parent=1 // pred_check
      %p1133 = pneg %p1132
    $region23: #{tpu_custom_call.1} parent=1 // pred_check_branch
      %1135 = sbr.rel (%p1133) target = $region25
    $region24: #{tpu_custom_call.1} parent=1 // pred_region
      %1136 = vst [vmem:[#allocation5] sm:$0x1] 0.0
    $region25: #{tpu_custom_call.1} parent=1 // pred_fallthru
      _
    %v1137 = vld [vmem:[#allocation5] sm:$0x1]
    %v1138 = vadd.f32 %v1137, %v1131
    %1139 = vst [vmem:[#allocation5] sm:$0x1] %v1138
    // Predicated region
    $region26: #{tpu_custom_call.1} parent=1 // pred_check
      _
    $region27: #{tpu_custom_call.1} parent=1 // pred_check_branch
      %1141 = sbr.rel (0) target = $region29
    $region28: #{tpu_custom_call.1} parent=1 // pred_region
      %1143 = vsyncadd [#allocation3], 0
      %s1145 = sshll.u32 [#allocation5], 4
      %s1146 = int_to_ptr.vmem [resolvable:$true] %s1145
      %s1147 = sshll.u32 %s4, 4
      %s1148 = int_to_ptr.hbm [resolvable:$true] %s1147
      %1150 = dma.vmem_to_hbm [thread:$0]  %s1146, 16, %s1148, [#allocation3]
    $region29: #{tpu_custom_call.1} parent=1 // pred_fallthru
      _
    // Predicated region
    $region30: #{tpu_custom_call.1} parent=1 // pred_check
      _
    $region31: #{tpu_custom_call.1} parent=1 // pred_check_branch
      %1152 = sbr.rel (0) target = $region33
    $region32: #{tpu_custom_call.1} parent=1 // pred_region
      %1154 = dma.done [#allocation3], 16
    $region33: #{tpu_custom_call.1} parent=1 // pred_fallthru
      _
    %1155 = vsyncpa [#allocation3], 1
    %1156 = vsyncpa [#allocation4], 1

</llo_original>
